<compile_context>
chip_gen: v6e
topology: v6e:2x2x1
jax: 0.10.0
libtpu: 0.0.40
codegen_flags: <defaults>
</compile_context>

<pallas_src>
import functools
import math
from typing import NamedTuple

import jax
import jax.numpy as jnp
from jax.experimental import pallas as pl
from jax.experimental.pallas import tpu as pltpu


def _pick_tile(dim, want, align):
    """Largest tile t <= want with dim % t == 0 and t % align == 0 (else full dim)."""
    want = min(want, dim)
    for t in range(want, 0, -1):
        if dim % t == 0 and t % align == 0:
            return t
    return dim  # full dim is always a legal block shape


class GateLayerParams(NamedTuple):
    w_packed: jax.Array   # (d_in, 2*d_out), block-interleaved [lin | gate] per N tile
    b_packed: jax.Array   # (1, 2*d_out), same interleaving
    tn: int               # N tile width used for the interleaving
    d_out: int


def prepare_gate_layer_params(w_linear, b_linear, w_gate, b_gate, *, tn=None):
    """One-time parameter packing. Call at setup, NOT per forward call.

    Packs [W_linear^T | W_gate^T] block-interleaved along the output dim so
    each N tile of width 2*tn holds that tile's `linear` columns followed by
    its `gate` columns -> a single MXU matmul / accumulator per grid step.
    (For very small batch on v7x, a smaller tn gives the second TensorCore work.)
    """
    d_out, d_in = w_linear.shape
    if tn is None:
        tn = _pick_tile(d_out, 256, 128)
    assert d_out % tn == 0
    nb = d_out // tn

    wl = jnp.transpose(w_linear).reshape(d_in, nb, 1, tn)   # (d_in, nb, 1, tn)
    wg = jnp.transpose(w_gate).reshape(d_in, nb, 1, tn)
    w_packed = jnp.concatenate([wl, wg], axis=2).reshape(d_in, 2 * d_out)

    bl = b_linear.reshape(nb, 1, tn)
    bg = b_gate.reshape(nb, 1, tn)
    b_packed = jnp.concatenate([bl, bg], axis=1).reshape(1, 2 * d_out)

    return GateLayerParams(w_packed, b_packed, int(tn), int(d_out))


def _gate_kernel_single(x_ref, w_ref, b_ref, o_ref, *, tn):
    """K fits in one tile: dot -> +bias -> sigmoid -> store, no scratch."""
    acc = jnp.dot(x_ref[...], w_ref[...], preferred_element_type=jnp.float32)
    acc = acc + b_ref[...].astype(jnp.float32)
    lin = acc[:, :tn]
    gate = acc[:, tn:]
    sig = pl.reciprocal(1.0 + jnp.exp(-gate), approx=True)   # exp+recip on EUP
    o_ref[...] = (lin * sig).astype(o_ref.dtype)


def _gate_kernel_multi(x_ref, w_ref, b_ref, o_ref, acc_ref, *, tn):
    """K-blocked path: single (tm, 2*tn) f32 accumulator, bias folded into init."""
    k = pl.program_id(2)

    @pl.when(k == 0)
    def _():
        acc_ref[...] = jnp.broadcast_to(
            b_ref[...].astype(jnp.float32), acc_ref.shape)

    acc_ref[...] += jnp.dot(x_ref[...], w_ref[...],
                            preferred_element_type=jnp.float32)

    @pl.when(k == pl.num_programs(2) - 1)
    def _():
        acc = acc_ref[...]
        lin = acc[:, :tn]
        gate = acc[:, tn:]
        sig = pl.reciprocal(1.0 + jnp.exp(-gate), approx=True)
        o_ref[...] = (lin * sig).astype(o_ref.dtype)


def gate_layer_apply(params: GateLayerParams, x, *, tm=256, tk=None):
    """Forward pass: out = linear(x) * sigmoid(gate(x)) with pre-packed params."""
    w_packed, b_packed, tn, d_out = params
    orig_shape = x.shape
    d_in = orig_shape[-1]
    assert w_packed.shape[0] == d_in, (w_packed.shape, d_in)
    M = math.prod(orig_shape[:-1])
    x2 = x.reshape(M, d_in)

    tm = _pick_tile(M, tm, 8)
    if tk is None:
        tk = d_in                     # single-K fast path whenever it fits
    tk = _pick_tile(d_in, tk, 128)

    m_blocks = M // tm
    n_blocks = d_out // tn
    k_blocks = d_in // tk

    # Rough double-buffered VMEM footprint; only raise the limit when needed.
    dt = jnp.dtype(x.dtype).itemsize
    footprint = (2 * tm * tk * dt            # x tiles
                 + 2 * tk * 2 * tn * dt      # packed weight tiles
                 + 2 * 2 * tn * dt           # packed bias
                 + 2 * tm * tn * dt          # output tiles
                 + tm * 2 * tn * 4)          # f32 accumulator (multi-K only)
    compiler_kwargs = {}
    if footprint > 24 * 1024 * 1024:
        compiler_kwargs["vmem_limit_bytes"] = min(int(footprint * 1.5),
                                                  96 * 1024 * 1024)

    if k_blocks == 1:
        kernel = functools.partial(_gate_kernel_single, tn=tn)
        grid = (m_blocks, n_blocks)
        in_specs = [
            pl.BlockSpec((tm, tk), lambda i, j: (i, 0)),        # x
            pl.BlockSpec((tk, 2 * tn), lambda i, j: (0, j)),    # packed weights
            pl.BlockSpec((1, 2 * tn), lambda i, j: (0, j)),     # packed bias
        ]
        out_spec = pl.BlockSpec((tm, tn), lambda i, j: (i, j))
        scratch = []
        dim_sem = ("parallel", "parallel")
    else:
        kernel = functools.partial(_gate_kernel_multi, tn=tn)
        grid = (m_blocks, n_blocks, k_blocks)
        in_specs = [
            pl.BlockSpec((tm, tk), lambda i, j, k: (i, k)),     # x
            pl.BlockSpec((tk, 2 * tn), lambda i, j, k: (k, j)), # packed weights
            pl.BlockSpec((1, 2 * tn), lambda i, j, k: (0, j)),  # packed bias
        ]
        out_spec = pl.BlockSpec((tm, tn), lambda i, j, k: (i, j))
        scratch = [pltpu.VMEM((tm, 2 * tn), jnp.float32)]
        dim_sem = ("parallel", "parallel", "arbitrary")

    out2 = pl.pallas_call(
        kernel,
        out_shape=jax.ShapeDtypeStruct((M, d_out), x.dtype),
        grid_spec=pltpu.PrefetchScalarGridSpec(
            num_scalar_prefetch=0,
            grid=grid,
            in_specs=in_specs,
            out_specs=out_spec,
            scratch_shapes=scratch,
        ),
        compiler_params=pltpu.CompilerParams(
            dimension_semantics=dim_sem, **compiler_kwargs),
    )(x2, w_packed, b_packed)

    return out2.reshape(*orig_shape[:-1], d_out)


def gate_layer(x, w_linear, b_linear, w_gate, b_gate, **kwargs):
    """Convenience wrapper (re-packs weights each call; prefer prepare + apply)."""
    params = prepare_gate_layer_params(w_linear, b_linear, w_gate, b_gate)
    return gate_layer_apply(params, x, **kwargs)


if __name__ == "__main__":
    key = jax.random.PRNGKey(0)
    batch, seq, d_input, d_output = 2, 8, 256, 128

    k1, k2, k3, k4, k5 = jax.random.split(key, 5)
    x = jax.random.normal(k1, (batch, seq, d_input), dtype=jnp.float32)
    w_linear = jax.random.normal(k2, (d_output, d_input), dtype=jnp.float32) * 0.05
    b_linear = jax.random.normal(k3, (d_output,), dtype=jnp.float32) * 0.05
    w_gate = jax.random.normal(k4, (d_output, d_input), dtype=jnp.float32) * 0.05
    b_gate = jax.random.normal(k5, (d_output,), dtype=jnp.float32) * 0.05

    # One-time packing (transpose + concat happen here, NOT per forward call).
    params = prepare_gate_layer_params(w_linear, b_linear, w_gate, b_gate)

    # Pure-JAX reference of GateLayer.forward.
    lin_ref = x @ w_linear.T + b_linear
    gate_ref = x @ w_gate.T + b_gate
    ref = lin_ref * jax.nn.sigmoid(gate_ref)

    # Fast path: tk = d_input -> single K step, no scratch accumulator.
    y_fast = jax.block_until_ready(gate_layer_apply(params, x))
    assert y_fast.shape == ref.shape, (y_fast.shape, ref.shape)
    err_fast = float(jnp.max(jnp.abs(y_fast - ref)))
    assert jnp.allclose(y_fast, ref, rtol=1e-2, atol=1e-2), f"max_err={err_fast}"

    # K-blocked path: tk=128 -> 2 reduction steps, exercises the accumulator.
    y_multi = jax.block_until_ready(gate_layer_apply(params, x, tk=128))
    err_multi = float(jnp.max(jnp.abs(y_multi - ref)))
    assert jnp.allclose(y_multi, ref, rtol=1e-2, atol=1e-2), f"max_err={err_multi}"

    print("KERNEL_OK")
</pallas_src>

<mosaic_0001>
module attributes {stable_mosaic.version = 11 : i64} {
  func.func @_gate_kernel_single(%arg0: i32, %arg1: i32, %arg2: memref<16x256xf32, #tpu.memory_space<vmem>>, %arg3: memref<256x256xf32, #tpu.memory_space<vmem>>, %arg4: memref<1x256xf32, #tpu.memory_space<vmem>>, %arg5: memref<16x128xf32, #tpu.memory_space<vmem>>) attributes {dimension_semantics = [#tpu.dimension_semantics<parallel>, #tpu.dimension_semantics<parallel>], iteration_bounds = array<i64: 1, 1>, scalar_prefetch = 0 : i64, scratch_operands = 0 : i64, tpu.core_type = #tpu.core_type<tc>, window_params = [{transform_indices = @transform_0, window_bounds = array<i64: 16, 256>}, {transform_indices = @transform_1, window_bounds = array<i64: 256, 256>}, {transform_indices = @transform_2, window_bounds = array<i64: 1, 256>}, {transform_indices = @transform_3, window_bounds = array<i64: 16, 128>}]} {
    %c0 = arith.constant 0 : index
    %c0_0 = arith.constant 0 : index
    %0 = vector.load %arg2[%c0, %c0_0] : memref<16x256xf32, #tpu.memory_space<vmem>>, vector<16x256xf32>
    %c0_1 = arith.constant 0 : index
    %c0_2 = arith.constant 0 : index
    %1 = vector.load %arg3[%c0_1, %c0_2] : memref<256x256xf32, #tpu.memory_space<vmem>>, vector<256x256xf32>
    %cst = arith.constant dense<0.000000e+00> : vector<16x256xf32>
    %2 = tpu.matmul %0, %1, %cst {dimension_numbers = #tpu.dot_dimension_numbers<[1], [0], [0], [1], [0, 0, 1, 1], [], []>} : vector<16x256xf32>, vector<256x256xf32>, vector<16x256xf32> -> vector<16x256xf32>
    %c0_3 = arith.constant 0 : index
    %c0_4 = arith.constant 0 : index
    %3 = vector.load %arg4[%c0_3, %c0_4] : memref<1x256xf32, #tpu.memory_space<vmem>>, vector<1x256xf32>
    %4 = vector.broadcast %3 : vector<1x256xf32> to vector<16x256xf32>
    %5 = arith.addf %2, %4 : vector<16x256xf32>
    %6 = vector.extract_strided_slice %5 {offsets = [0, 0], sizes = [16, 128], strides = [1, 1]} : vector<16x256xf32> to vector<16x128xf32>
    %7 = vector.extract_strided_slice %5 {offsets = [0, 128], sizes = [16, 128], strides = [1, 1]} : vector<16x256xf32> to vector<16x128xf32>
    %cst_5 = arith.constant 0.000000e+00 : f32
    %8 = vector.broadcast %cst_5 : f32 to vector<16x128xf32>
    %9 = arith.subf %8, %7 : vector<16x128xf32>
    %10 = math.exp %9 : vector<16x128xf32>
    %cst_6 = arith.constant 1.000000e+00 : f32
    %11 = vector.broadcast %cst_6 : f32 to vector<16x128xf32>
    %12 = arith.addf %11, %10 : vector<16x128xf32>
    %13 = tpu.reciprocal %12 {approx = true} : vector<16x128xf32> -> vector<16x128xf32>
    %14 = arith.mulf %6, %13 : vector<16x128xf32>
    %c0_7 = arith.constant 0 : index
    %c0_8 = arith.constant 0 : index
    %15 = vector.load %arg5[%c0_7, %c0_8] : memref<16x128xf32, #tpu.memory_space<vmem>>, vector<16x128xf32>
    tpu.vector_store %arg5[%c0_7, %c0_8], %14 {strides = array<i32>} : memref<16x128xf32, #tpu.memory_space<vmem>>, vector<16x128xf32>,
    return
  }
  func.func @transform_0(%arg0: i32, %arg1: i32) -> (i32, i32) {
    %c0_i32 = arith.constant 0 : i32
    %c0_i32_0 = arith.constant 0 : i32
    return %arg0, %c0_i32 : i32, i32
  }
  func.func @transform_1(%arg0: i32, %arg1: i32) -> (i32, i32) {
    %c0_i32 = arith.constant 0 : i32
    %c0_i32_0 = arith.constant 0 : i32
    return %c0_i32, %arg1 : i32, i32
  }
  func.func @transform_2(%arg0: i32, %arg1: i32) -> (i32, i32) {
    %c0_i32 = arith.constant 0 : i32
    %c0_i32_0 = arith.constant 0 : i32
    return %c0_i32, %arg1 : i32, i32
  }
  func.func @transform_3(%arg0: i32, %arg1: i32) -> (i32, i32) {
    %c0_i32 = arith.constant 0 : i32
    return %arg0, %arg1 : i32, i32
  }
}

</mosaic_0001>

<llo_original>
// kernel: tpu_custom_call.1
$region0: #{tpu_custom_call.1}
  #allocation0 [shape = 'u32[]', space=smem, size = 0x4, offset = 0x4, fixed_abs, tag = 'smem constant byte address 0x4 - core index']
  #allocation1 [shape = 'u32[144,128]{1,0:T(1,128)}', space=vmem, size = 0x12000, scoped, tag = 'internal scratch']
  %s0 = inlined_call_operand.hbm [shape: f32[16,256], index: 0, kind: input, shape index: {}]
  %s1 = inlined_call_operand.hbm [shape: f32[256,256], index: 1, kind: input, shape index: {}]
  %s2 = inlined_call_operand.vmem [shape: f32[1,256], index: 2, kind: input, shape index: {}]
  %s3 = inlined_call_operand.hbm [shape: f32[16,128], index: 3, kind: output, shape index: {}]
  %s4 = sld [smem:[#allocation0]]
  $region30: #{tpu_custom_call.1} parent=0
    _
  %s6 = ssub.s32 1, %s4
  %s7 = scalar_select 0, %s6, %s4
  $region1: #{tpu_custom_call.1} parent=0
    #allocation2 [shape = 'u8[16384]{0}', space=vmem, size = 0x4000, scoped, tag = 'input window, operand 0, single buffered']
    #allocation3 [shape = 's32[1]{0}', space=sflag, size = 0x4, scoped, tag = 'scoped memory for tpu_custom_call.1']
    #allocation4 [shape = 's32[1]{0}', space=sflag, size = 0x4, scoped, tag = 'scoped memory for tpu_custom_call.1']
    #allocation5 [shape = 'u8[262144]{0}', space=vmem, size = 0x40000, scoped, tag = 'input window, operand 1, single buffered']
    #allocation6 [shape = 's32[1]{0}', space=sflag, size = 0x4, scoped, tag = 'scoped memory for tpu_custom_call.1']
    #allocation7 [shape = 'u8[8192]{0}', space=vmem, size = 0x2000, scoped, tag = 'output window, operand 0, single buffered']
    %8 = vsyncpa [#allocation3], 0
    %9 = vsyncpa [#allocation6], 0
    %10 = vsyncpa [#allocation4], 0
    // Predicated region
    $region2: #{tpu_custom_call.1} parent=1 // pred_check
      _
    $region3: #{tpu_custom_call.1} parent=1 // pred_check_branch
      %12 = sbr.rel (0) target = $region5
    $region4: #{tpu_custom_call.1} parent=1 // pred_region
      %s14 = ssub.s32 512, 512
      %15 = vsyncadd [#allocation3], %s14
      %s16 = sshll.u32 [#allocation2], 4
      %s17 = int_to_ptr.vmem [resolvable:$true] %s16
      %22 = dma.hbm_to_vmem [thread:$0]  %s0, 512, %s17, [#allocation3], 256, 256, 16
    $region5: #{tpu_custom_call.1} parent=1 // pred_fallthru
      _
    // Predicated region
    $region6: #{tpu_custom_call.1} parent=1 // pred_check
      _
    $region7: #{tpu_custom_call.1} parent=1 // pred_check_branch
      %24 = sbr.rel (0) target = $region9
    $region8: #{tpu_custom_call.1} parent=1 // pred_region
      %s26 = ssub.s32 8192, 8192
      %27 = vsyncadd [#allocation6], %s26
      %s28 = sshll.u32 [#allocation5], 4
      %s29 = int_to_ptr.vmem [resolvable:$true] %s28
      %34 = dma.hbm_to_vmem [thread:$0]  %s1, 8192, %s29, [#allocation6], 256, 256, 16
    $region9: #{tpu_custom_call.1} parent=1 // pred_fallthru
      _
    // Predicated region
    $region10: #{tpu_custom_call.1} parent=1 // pred_check
      _
    $region11: #{tpu_custom_call.1} parent=1 // pred_check_branch
      %36 = sbr.rel (0) target = $region13
    $region12: #{tpu_custom_call.1} parent=1 // pred_region
      _
    $region13: #{tpu_custom_call.1} parent=1 // pred_fallthru
      _
    // Predicated region
    $region14: #{tpu_custom_call.1} parent=1 // pred_check
      _
    $region15: #{tpu_custom_call.1} parent=1 // pred_check_branch
      %38 = sbr.rel (0) target = $region17
    $region16: #{tpu_custom_call.1} parent=1 // pred_region
      %39 = dma.done [#allocation3], 512
    $region17: #{tpu_custom_call.1} parent=1 // pred_fallthru
      _
    // Predicated region
    $region18: #{tpu_custom_call.1} parent=1 // pred_check
      _
    $region19: #{tpu_custom_call.1} parent=1 // pred_check_branch
      %41 = sbr.rel (0) target = $region21
    $region20: #{tpu_custom_call.1} parent=1 // pred_region
      %42 = dma.done [#allocation6], 8192
    $region21: #{tpu_custom_call.1} parent=1 // pred_fallthru
      _
    %v43 = vld [vmem:[#allocation2] sm:$0xff]
    %v44 = vld [vmem:[#allocation2 + $0x8] sm:$0xff]
    %v45 = vld [vmem:[#allocation2 + $0x10] sm:$0xff]
    %v46 = vld [vmem:[#allocation2 + $0x18] sm:$0xff]
    %v47 = vld [vmem:[#allocation5] sm:$0xff]
    %v48 = vld [vmem:[#allocation5 + $0x8] sm:$0xff]
    %v49 = vld [vmem:[#allocation5 + $0x10] sm:$0xff]
    %v50 = vld [vmem:[#allocation5 + $0x18] sm:$0xff]
    %v51 = vld [vmem:[#allocation5 + $0x20] sm:$0xff]
    %v52 = vld [vmem:[#allocation5 + $0x28] sm:$0xff]
    %v53 = vld [vmem:[#allocation5 + $0x30] sm:$0xff]
    %v54 = vld [vmem:[#allocation5 + $0x38] sm:$0xff]
    %v55 = vld [vmem:[#allocation5 + $0x40] sm:$0xff]
    %v56 = vld [vmem:[#allocation5 + $0x48] sm:$0xff]
    %v57 = vld [vmem:[#allocation5 + $0x50] sm:$0xff]
    %v58 = vld [vmem:[#allocation5 + $0x58] sm:$0xff]
    %v59 = vld [vmem:[#allocation5 + $0x60] sm:$0xff]
    %v60 = vld [vmem:[#allocation5 + $0x68] sm:$0xff]
    %v61 = vld [vmem:[#allocation5 + $0x70] sm:$0xff]
    %v62 = vld [vmem:[#allocation5 + $0x78] sm:$0xff]
    %v63 = vld [vmem:[#allocation5 + $0x80] sm:$0xff]
    %v64 = vld [vmem:[#allocation5 + $0x88] sm:$0xff]
    %v65 = vld [vmem:[#allocation5 + $0x90] sm:$0xff]
    %v66 = vld [vmem:[#allocation5 + $0x98] sm:$0xff]
    %v67 = vld [vmem:[#allocation5 + $0xa0] sm:$0xff]
    %v68 = vld [vmem:[#allocation5 + $0xa8] sm:$0xff]
    %v69 = vld [vmem:[#allocation5 + $0xb0] sm:$0xff]
    %v70 = vld [vmem:[#allocation5 + $0xb8] sm:$0xff]
    %v71 = vld [vmem:[#allocation5 + $0xc0] sm:$0xff]
    %v72 = vld [vmem:[#allocation5 + $0xc8] sm:$0xff]
    %v73 = vld [vmem:[#allocation5 + $0xd0] sm:$0xff]
    %v74 = vld [vmem:[#allocation5 + $0xd8] sm:$0xff]
    %v75 = vld [vmem:[#allocation5 + $0xe0] sm:$0xff]
    %v76 = vld [vmem:[#allocation5 + $0xe8] sm:$0xff]
    %v77 = vld [vmem:[#allocation5 + $0xf0] sm:$0xff]
    %v78 = vld [vmem:[#allocation5 + $0xf8] sm:$0xff]
    %v79 = vld [vmem:[#allocation5 + $0x100] sm:$0xff]
    %v80 = vld [vmem:[#allocation5 + $0x108] sm:$0xff]
    %v81 = vld [vmem:[#allocation5 + $0x110] sm:$0xff]
    %v82 = vld [vmem:[#allocation5 + $0x118] sm:$0xff]
    %v83 = vld [vmem:[#allocation5 + $0x120] sm:$0xff]
    %v84 = vld [vmem:[#allocation5 + $0x128] sm:$0xff]
    %v85 = vld [vmem:[#allocation5 + $0x130] sm:$0xff]
    %v86 = vld [vmem:[#allocation5 + $0x138] sm:$0xff]
    %v87 = vld [vmem:[#allocation5 + $0x140] sm:$0xff]
    %v88 = vld [vmem:[#allocation5 + $0x148] sm:$0xff]
    %v89 = vld [vmem:[#allocation5 + $0x150] sm:$0xff]
    %v90 = vld [vmem:[#allocation5 + $0x158] sm:$0xff]
    %v91 = vld [vmem:[#allocation5 + $0x160] sm:$0xff]
    %v92 = vld [vmem:[#allocation5 + $0x168] sm:$0xff]
    %v93 = vld [vmem:[#allocation5 + $0x170] sm:$0xff]
    %v94 = vld [vmem:[#allocation5 + $0x178] sm:$0xff]
    %v95 = vld [vmem:[#allocation5 + $0x180] sm:$0xff]
    %v96 = vld [vmem:[#allocation5 + $0x188] sm:$0xff]
    %v97 = vld [vmem:[#allocation5 + $0x190] sm:$0xff]
    %v98 = vld [vmem:[#allocation5 + $0x198] sm:$0xff]
    %v99 = vld [vmem:[#allocation5 + $0x1a0] sm:$0xff]
    %v100 = vld [vmem:[#allocation5 + $0x1a8] sm:$0xff]
    %v101 = vld [vmem:[#allocation5 + $0x1b0] sm:$0xff]
    %v102 = vld [vmem:[#allocation5 + $0x1b8] sm:$0xff]
    %v103 = vld [vmem:[#allocation5 + $0x1c0] sm:$0xff]
    %v104 = vld [vmem:[#allocation5 + $0x1c8] sm:$0xff]
    %v105 = vld [vmem:[#allocation5 + $0x1d0] sm:$0xff]
    %v106 = vld [vmem:[#allocation5 + $0x1d8] sm:$0xff]
    %v107 = vld [vmem:[#allocation5 + $0x1e0] sm:$0xff]
    %v108 = vld [vmem:[#allocation5 + $0x1e8] sm:$0xff]
    %v109 = vld [vmem:[#allocation5 + $0x1f0] sm:$0xff]
    %v110 = vld [vmem:[#allocation5 + $0x1f8] sm:$0xff]
    %v111 = vld [vmem:[%s2] sm:$0x3]
    %v113 = vlaneseq
    %v114 = vshrl.u32 %v113, 7
    %v115 = vsub.s32 0, %v114
    %v116 = vrot.slane %v111, %v115
    %v117 = vlaneseq
    %v118 = vshrl.u32 %v117, 7
    %v119 = vsub.s32 1, %v118
    %v120 = vrot.slane %v111, %v119
    %123 = vmatprep.subr.mxu0 %v78
    %124 = vmatpush1.msra.mxu0 %v77
    %125 = vmatprep.subr.mxu0 %v76
    %126 = vmatpush1.msra.mxu0 %v75
    %127 = vmatprep.subr.mxu0 %v74
    %128 = vmatpush1.msra.mxu0 %v73
    %129 = vmatprep.subr.mxu0 %v72
    %130 = vmatpush1.msra.mxu0 %v71
    %131 = vmatprep.subr.mxu0 %v70
    %132 = vmatpush1.msra.mxu0 %v69
    %133 = vmatprep.subr.mxu0 %v68
    %134 = vmatpush1.msra.mxu0 %v67
    %135 = vmatprep.subr.mxu0 %v66
    %136 = vmatpush1.msra.mxu0 %v65
    %137 = vmatprep.subr.mxu0 %v64
    %138 = vmatpush1.msra.mxu0 %v63
    %139 = vmatprep.subr.mxu0 %v62
    %140 = vmatpush1.msra.mxu0 %v61
    %141 = vmatprep.subr.mxu0 %v60
    %142 = vmatpush1.msra.mxu0 %v59
    %143 = vmatprep.subr.mxu0 %v58
    %144 = vmatpush1.msra.mxu0 %v57
    %145 = vmatprep.subr.mxu0 %v56
    %146 = vmatpush1.msra.mxu0 %v55
    %147 = vmatprep.subr.mxu0 %v54
    %148 = vmatpush1.msra.mxu0 %v53
    %149 = vmatprep.subr.mxu0 %v52
    %150 = vmatpush1.msra.mxu0 %v51
    %151 = vmatprep.subr.mxu0 %v50
    %152 = vmatpush1.msra.mxu0 %v49
    %153 = vmatprep.subr.mxu0 %v48
    %154 = vmatpush1.msra.mxu0 %v47
    %155 = vmatprep.subr.mxu0 %v110
    %156 = vmatpush2.msra.mxu0 %v109
    %157 = vmatprep.subr.mxu0 %v108
    %158 = vmatpush2.msra.mxu0 %v107
    %159 = vmatprep.subr.mxu0 %v106
    %160 = vmatpush2.msra.mxu0 %v105
    %161 = vmatprep.subr.mxu0 %v104
    %162 = vmatpush2.msra.mxu0 %v103
    %163 = vmatprep.subr.mxu0 %v102
    %164 = vmatpush2.msra.mxu0 %v101
    %165 = vmatprep.subr.mxu0 %v100
    %166 = vmatpush2.msra.mxu0 %v99
    %167 = vmatprep.subr.mxu0 %v98
    %168 = vmatpush2.msra.mxu0 %v97
    %169 = vmatprep.subr.mxu0 %v96
    %170 = vmatpush2.msra.mxu0 %v95
    %171 = vmatprep.subr.mxu0 %v94
    %172 = vmatpush2.msra.mxu0 %v93
    %173 = vmatprep.subr.mxu0 %v92
    %174 = vmatpush2.msra.mxu0 %v91
    %175 = vmatprep.subr.mxu0 %v90
    %176 = vmatpush2.msra.mxu0 %v89
    %177 = vmatprep.subr.mxu0 %v88
    %178 = vmatpush2.msra.mxu0 %v87
    %179 = vmatprep.subr.mxu0 %v86
    %180 = vmatpush2.msra.mxu0 %v85
    %181 = vmatprep.subr.mxu0 %v84
    %182 = vmatpush2.msra.mxu0 %v83
    %183 = vmatprep.subr.mxu0 %v82
    %184 = vmatpush2.msra.mxu0 %v81
    %185 = vmatprep.subr.mxu0 %v80
    %186 = vmatpush2.msra.mxu0 %v79
    %187 = vmatprep.mubr.f32.mxu0 %v44
    %188 = vmatmul.mubr.f32.gmra.mxu0 %v43
    %v189 = vpop.f32.mrf.mxu0
    %v190 = vadd.f32 %v116, %v189
    %v191 = vpop.f32.mrf.mxu0
    %v192 = vadd.f32 %v120, %v191
    %193 = vmatprep.mubr.f32.mxu0 %v46
    %194 = vmatmul.mubr.f32.gmra.mxu0 %v45
    %v195 = vpop.f32.mrf.mxu0
    %v196 = vadd.f32 %v116, %v195
    %v197 = vpop.f32.mrf.mxu0
    %v198 = vadd.f32 %v120, %v197
    %199 = vdwg.mxu0
    %v200 = vsub.f32 0.0, %v192
    %v201 = vsub.f32 0.0, %v198
    %v202 = vmul.f32 %v200, 1.442695
    %v203 = vpow.pop %v202
    %v204 = vmul.f32 %v201, 1.442695
    %v205 = vpow.pop %v204
    %v206 = vadd.f32 %v203, 1.0
    %v207 = vadd.f32 %v205, 1.0
    %v208 = vrcp.pop %v206
    %v209 = vrcp.pop %v207
    %v210 = vmul.f32 %v190, %v208
    %v211 = vmul.f32 %v196, %v209
    %212 = vst [vmem:[#allocation7] sm:$0xff] %v210
    %213 = vst [vmem:[#allocation7 + $0x8] sm:$0xff] %v211
    // Predicated region
    $region22: #{tpu_custom_call.1} parent=1 // pred_check
      _
    $region23: #{tpu_custom_call.1} parent=1 // pred_check_branch
      %215 = sbr.rel (0) target = $region25
    $region24: #{tpu_custom_call.1} parent=1 // pred_region
      %s217 = ssub.s32 256, 256
      %218 = vsyncadd [#allocation4], %s217
      %s219 = sshll.u32 [#allocation7], 4
      %s220 = int_to_ptr.vmem [resolvable:$true] %s219
      %225 = dma.vmem_to_hbm [thread:$0]  %s220, 256, %s3, [#allocation4], 128, 128, 8
    $region25: #{tpu_custom_call.1} parent=1 // pred_fallthru
      _
    // Predicated region
    $region26: #{tpu_custom_call.1} parent=1 // pred_check
      _
    $region27: #{tpu_custom_call.1} parent=1 // pred_check_branch
      %227 = sbr.rel (0) target = $region29
    $region28: #{tpu_custom_call.1} parent=1 // pred_region
      %228 = dma.done [#allocation4], 256
    $region29: #{tpu_custom_call.1} parent=1 // pred_fallthru
      _
    %229 = vsyncpa [#allocation3], 1
    %230 = vsyncpa [#allocation6], 1
    %231 = vsyncpa [#allocation4], 1

</llo_original>
